<compile_context>
chip_gen: v7x
topology: tpu7x:2x2x1
jax: 0.10.0
libtpu: 0.0.40
codegen_flags: <defaults>
</compile_context>

<pallas_src>
import functools

import jax
import jax.numpy as jnp
from jax.experimental import pallas as pl
from jax.experimental.pallas import tpu as pltpu

_OUT_W = 128  # lane-dense width of the reduced per-(batch, half) outputs (>=128 => unmasked vst)


def _focal_ce_kernel(preds_ref, labels_ref, sum_out_ref, cnt_out_ref,
                     sum_acc, cnt_acc, *, ignore_index, n_px, tiles_per_half,
                     need_px_mask):
    """Accumulate per-lane sum of -log_softmax(preds)[label] and valid-pixel count.

    preds_ref   : (C, TPX) float    classes on sublanes, pixels on lanes
    labels_ref  : (1, TPX) int
    sum_out_ref : (1, _OUT_W) f32   reduced CE-sum for this (batch, half)
    cnt_out_ref : (1, _OUT_W) i32   reduced valid-pixel count for this (batch, half)
    sum_acc     : (1, TPX) f32      lane-parallel VMEM accumulator
    cnt_acc     : (1, TPX) i32      lane-parallel VMEM accumulator (exact count)
    """
    h = pl.program_id(1)   # pixel-axis half (megacore parallel)
    j = pl.program_id(2)   # pixel tile within the half (reduction axis)

    @pl.when(j == 0)
    def _():
        sum_acc[...] = jnp.zeros_like(sum_acc)
        cnt_acc[...] = jnp.zeros_like(cnt_acc)

    x = preds_ref[...].astype(jnp.float32)           # (C, TPX)
    lbl = labels_ref[...].astype(jnp.int32)          # (1, TPX)

    # Numerically stable log-sum-exp over the class (sublane) axis.
    m = jnp.max(x, axis=0, keepdims=True)                                   # (1, TPX)
    lse = m + jnp.log(jnp.sum(jnp.exp(x - m), axis=0, keepdims=True))       # (1, TPX)

    # Gather the logit at the target class via a one-hot compare (no dynamic gather).
    cls_ids = jax.lax.broadcasted_iota(jnp.int32, x.shape, 0)               # (C, TPX)
    target_logit = jnp.sum(jnp.where(cls_ids == lbl, x, 0.0),
                           axis=0, keepdims=True)                           # (1, TPX)
    neg_logp = lse - target_logit                    # -log p_target, (1, TPX)

    # Mask ignore_index pixels; additionally mask padded / phantom-tile pixels, but only
    # when the tiling does not divide H*W exactly (compile-time check -> no VALU filler
    # in the common divisible case).
    valid = lbl != ignore_index
    if need_px_mask:
        tpx = x.shape[1]
        t = h * tiles_per_half + j                   # global pixel-tile index
        px_ids = jax.lax.broadcasted_iota(jnp.int32, (1, tpx), 1) + t * tpx
        valid = valid & (px_ids < n_px)

    # Lane-parallel accumulation (no per-step cross-lane reduction).
    sum_acc[...] += jnp.where(valid, neg_logp, 0.0)
    cnt_acc[...] += valid.astype(jnp.int32)

    # Single cross-lane (XLU) reduce per (batch, half), written to a narrow lane-dense
    # output block; the count stays int32 so it is exact.
    @pl.when(j == pl.num_programs(2) - 1)
    def _():
        s = jnp.sum(sum_acc[...], axis=1, keepdims=True)    # (1, 1) f32
        c = jnp.sum(cnt_acc[...], axis=1, keepdims=True)    # (1, 1) i32
        sum_out_ref[...] = jnp.broadcast_to(s, sum_out_ref.shape)
        cnt_out_ref[...] = jnp.broadcast_to(c, cnt_out_ref.shape)


def _auto_tile_and_limit(C, HW, preds_dtype, labels_dtype):
    """Generation-aware pixel-tile width and explicit scoped-VMEM limit.

    Budget counts: double-buffered preds block (sublane-padded C), double-buffered
    labels block (a 1-row block occupies a full 8/16/32-sublane tile), plus the two
    lane-wide accumulators. Outputs are 128 lanes wide -> negligible.
    """
    p_isz = jnp.dtype(preds_dtype).itemsize
    l_isz = jnp.dtype(labels_dtype).itemsize
    try:
        cap = int(pltpu.get_tpu_info().vmem_capacity_bytes)
    except Exception:
        cap = 64 * 1024 * 1024          # conservative fallback (v7x per-TC VMEM)

    sub_for = {4: 8, 2: 16, 1: 32}
    sub_p = sub_for.get(p_isz, 8)
    sub_l = sub_for.get(l_isz, 8)
    c_pad = -(-C // sub_p) * sub_p
    bytes_per_px = (2 * c_pad * p_isz        # preds block, double-buffered
                    + 2 * sub_l * l_isz      # labels block, sublane-padded, double-buffered
                    + 8 * 4                  # f32 sum accumulator (padded to 8 sublanes)
                    + 8 * 4)                 # i32 cnt accumulator (padded to 8 sublanes)

    budget = min(cap // 3, 40 * 1024 * 1024)          # ~21 MiB on v7x, 40 MiB on v5e/v6e
    tile = max(128, (budget // bytes_per_px) // 128 * 128)
    if tile >= HW:
        tile = HW                                      # full extent is always legal
    vmem_limit = int(min(cap * 3 // 4, max(2 * budget, 48 * 1024 * 1024)))
    return tile, vmem_limit


def focal_loss(preds, labels, *, alpha=0.5, gamma=2, ignore_index=255,
               tile_px=None, halves=None):
    """preds: (N, C, H, W) float; labels: (N, H, W) int. Returns scalar focal loss."""
    N, C, H, W = preds.shape
    HW = H * W

    # Accept any native integer label dtype (uint8/int16/int32) without a wrapper cast;
    # only non-integer labels are cast (rare). The in-kernel compare upcasts to int32.
    if not jnp.issubdtype(labels.dtype, jnp.integer):
        labels = labels.astype(jnp.int32)

    # Free reshapes: NCHW -> (N, C, H*W); NHW -> (N, 1, H*W). No transpose, no padding,
    # no dtype cast (bf16 preds pass straight through and are upcast in-kernel).
    preds3 = preds.reshape(N, C, HW)
    labels3 = labels.reshape(N, 1, HW)

    auto_tile, vmem_limit = _auto_tile_and_limit(C, HW, preds.dtype, labels.dtype)
    if tile_px is None:
        tile_px = auto_tile
    else:
        tile_px = min(int(tile_px), HW)
        if tile_px < HW:
            tile_px = max(128, (tile_px // 128) * 128)

    n_tiles = pl.cdiv(HW, tile_px)

    # Megacore: split the pixel axis into 2 parallel halves so both v7x TensorCores stay
    # busy even when N == 1 (no effect on single-TC v5e/v6e).
    if halves is None:
        halves = 2 if n_tiles >= 2 else 1
    tiles_per_half = pl.cdiv(n_tiles, halves)
    clamp_t = (halves * tiles_per_half) > n_tiles          # phantom tile exists (odd n_tiles)
    need_px_mask = (halves * tiles_per_half * tile_px) != HW

    def _tile_idx(hh, jj):
        t = hh * tiles_per_half + jj
        if clamp_t:
            # Phantom tile re-reads the last real tile (no OOB DMA); fully masked in-kernel.
            t = jnp.minimum(t, n_tiles - 1)
        return t

    preds_map = lambda n, h, j: (n, 0, _tile_idx(h, j))
    labels_map = lambda n, h, j: (n, 0, _tile_idx(h, j))
    out_map = lambda n, h, j: (n, h, 0, 0)

    kernel = functools.partial(
        _focal_ce_kernel, ignore_index=ignore_index, n_px=HW,
        tiles_per_half=tiles_per_half, need_px_mask=need_px_mask)

    part_sum, part_cnt = pl.pallas_call(
        kernel,
        out_shape=(
            jax.ShapeDtypeStruct((N, halves, 1, _OUT_W), jnp.float32),
            jax.ShapeDtypeStruct((N, halves, 1, _OUT_W), jnp.int32),
        ),
        grid_spec=pltpu.PrefetchScalarGridSpec(
            num_scalar_prefetch=0,
            grid=(N, halves, tiles_per_half),
            in_specs=[
                pl.BlockSpec((None, C, tile_px), preds_map),
                pl.BlockSpec((None, 1, tile_px), labels_map),
            ],
            out_specs=[
                pl.BlockSpec((None, None, 1, _OUT_W), out_map),
                pl.BlockSpec((None, None, 1, _OUT_W), out_map),
            ],
            scratch_shapes=[
                pltpu.VMEM((1, tile_px), jnp.float32),
                pltpu.VMEM((1, tile_px), jnp.int32),
            ],
        ),
        compiler_params=pltpu.CompilerParams(
            # batch & pixel-half -> megacore sharding on v7x; pixel tiles carry the reduction.
            dimension_semantics=("parallel", "parallel", "arbitrary"),
            vmem_limit_bytes=vmem_limit),
    )(preds3, labels3)

    # Tiny trailing reduction (N*halves scalars). Count summed in int32 -> exact.
    total_sum = jnp.sum(part_sum[..., 0])
    total_cnt = jnp.sum(part_cnt[..., 0])
    ce = total_sum / total_cnt.astype(jnp.float32)   # NaN if no valid pixel (matches torch)
    logpt = -ce
    pt = jnp.exp(logpt)
    return -((1.0 - pt) ** gamma) * alpha * logpt


def _reference_focal_loss(preds, labels, *, alpha=0.5, gamma=2, ignore_index=255):
    """Pure-JAX reference mirroring the PyTorch module."""
    N, C, H, W = preds.shape
    x = jnp.transpose(preds, (0, 2, 3, 1)).reshape(-1, C).astype(jnp.float32)
    lbl = labels.reshape(-1).astype(jnp.int32)
    logp = jax.nn.log_softmax(x, axis=-1)
    valid = lbl != ignore_index
    safe_lbl = jnp.where(valid, lbl, 0)
    nlp = -jnp.take_along_axis(logp, safe_lbl[:, None], axis=-1)[:, 0]
    ce = jnp.sum(jnp.where(valid, nlp, 0.0)) / jnp.sum(valid.astype(jnp.float32))
    logpt = -ce
    pt = jnp.exp(logpt)
    return -((1.0 - pt) ** gamma) * alpha * logpt


if __name__ == "__main__":
    key = jax.random.PRNGKey(0)

    # Test 1: small shape, auto tile (single full-extent pixel tile, halves=1).
    k1, k2, k3, key = *jax.random.split(key, 3), jax.random.split(key, 4)[3]
    N, C, H, W = 2, 4, 16, 16
    preds = jax.random.normal(k1, (N, C, H, W), dtype=jnp.float32)
    labels = jax.random.randint(k2, (N, H, W), 0, C, dtype=jnp.int32)
    labels = jnp.where(jax.random.bernoulli(k3, 0.1, (N, H, W)), 255, labels)

    loss = jax.block_until_ready(focal_loss(preds, labels))
    ref = _reference_focal_loss(preds, labels)
    assert jnp.allclose(loss, ref, rtol=1e-5, atol=1e-6), (loss, ref)

    # Test 2: half-split pixel axis (halves=2, 1 tile each) + partial last tile masking.
    # (H*W = 400, tile_px = 256 -> 2 tiles, second tile only 144 valid pixels.)
    k4, k5, k6, key = *jax.random.split(key, 3), jax.random.split(key, 4)[3]
    N2, C2, H2, W2 = 2, 5, 20, 20
    preds2 = jax.random.normal(k4, (N2, C2, H2, W2), dtype=jnp.float32)
    labels2 = jax.random.randint(k5, (N2, H2, W2), 0, C2, dtype=jnp.int32)
    labels2 = jnp.where(jax.random.bernoulli(k6, 0.1, (N2, H2, W2)), 255, labels2)

    loss2 = jax.block_until_ready(focal_loss(preds2, labels2, tile_px=256))
    ref2 = _reference_focal_loss(preds2, labels2)
    assert jnp.allclose(loss2, ref2, rtol=1e-5, atol=1e-6), (loss2, ref2)

    # Test 3: N=1 with odd tile count -> phantom-tile clamp + multi-step accumulation
    # per half. (H*W = 320, tile_px = 128 -> 3 tiles -> halves=2, 2 tiles/half, 1 phantom.)
    k7, k8, k9 = jax.random.split(key, 3)
    N3, C3, H3, W3 = 1, 4, 16, 20
    preds3_ = jax.random.normal(k7, (N3, C3, H3, W3), dtype=jnp.float32)
    labels3_ = jax.random.randint(k8, (N3, H3, W3), 0, C3, dtype=jnp.int32)
    labels3_ = jnp.where(jax.random.bernoulli(k9, 0.1, (N3, H3, W3)), 255, labels3_)

    loss3 = jax.block_until_ready(focal_loss(preds3_, labels3_, tile_px=128))
    ref3 = _reference_focal_loss(preds3_, labels3_)
    assert jnp.allclose(loss3, ref3, rtol=1e-5, atol=1e-6), (loss3, ref3)

    print("KERNEL_OK")
</pallas_src>

<mosaic_0001>
module attributes {stable_mosaic.version = 11 : i64} {
  func.func @_focal_ce_kernel(%arg0: i32, %arg1: i32, %arg2: i32, %arg3: memref<1x4x256xf32, #tpu.memory_space<vmem>>, %arg4: memref<1x1x256xi32, #tpu.memory_space<vmem>>, %arg5: memref<1x1x1x128xf32, #tpu.memory_space<vmem>>, %arg6: memref<1x1x1x128xi32, #tpu.memory_space<vmem>>, %arg7: memref<1x256xf32, #tpu.memory_space<vmem>>, %arg8: memref<1x256xi32, #tpu.memory_space<vmem>>) attributes {dimension_semantics = [#tpu.dimension_semantics<parallel>, #tpu.dimension_semantics<parallel>, #tpu.dimension_semantics<arbitrary>], iteration_bounds = array<i64: 2, 1, 1>, scalar_prefetch = 0 : i64, scratch_operands = 2 : i64, tpu.core_type = #tpu.core_type<tc>, window_params = [{transform_indices = @transform_0, window_bounds = array<i64: 1, 4, 256>}, {transform_indices = @transform_1, window_bounds = array<i64: 1, 1, 256>}, {transform_indices = @transform_2, window_bounds = array<i64: 1, 1, 1, 128>}, {transform_indices = @transform_3, window_bounds = array<i64: 1, 1, 1, 128>}]} {
    %c0_i32 = arith.constant 0 : i32
    %0 = arith.cmpi eq, %arg2, %c0_i32 : i32
    %1 = arith.extui %0 : i1 to i32
    %c0_i32_0 = arith.constant 0 : i32
    %2 = arith.cmpi ne, %1, %c0_i32_0 : i32
    scf.if %2 {
      %cst_20 = arith.constant 0.000000e+00 : f32
      %38 = vector.broadcast %cst_20 : f32 to vector<1x256xf32>
      %c0_21 = arith.constant 0 : index
      %c0_22 = arith.constant 0 : index
      %39 = vector.load %arg7[%c0_21, %c0_22] : memref<1x256xf32, #tpu.memory_space<vmem>>, vector<1x256xf32>
      tpu.vector_store %arg7[%c0_21, %c0_22], %38 {strides = array<i32>} : memref<1x256xf32, #tpu.memory_space<vmem>>, vector<1x256xf32>,
      %c0_i32_23 = arith.constant 0 : i32
      %40 = vector.broadcast %c0_i32_23 : i32 to vector<1x256xi32>
      %c0_24 = arith.constant 0 : index
      %c0_25 = arith.constant 0 : index
      %41 = vector.load %arg8[%c0_24, %c0_25] : memref<1x256xi32, #tpu.memory_space<vmem>>, vector<1x256xi32>
      tpu.vector_store %arg8[%c0_24, %c0_25], %40 {strides = array<i32>} : memref<1x256xi32, #tpu.memory_space<vmem>>, vector<1x256xi32>,
    } else {
    }
    %c0 = arith.constant 0 : index
    %c0_1 = arith.constant 0 : index
    %c0_2 = arith.constant 0 : index
    %3 = vector.load %arg3[%c0, %c0_1, %c0_2] : memref<1x4x256xf32, #tpu.memory_space<vmem>>, vector<1x4x256xf32>
    %4 = vector.shape_cast %3 : vector<1x4x256xf32> to vector<4x256xf32>
    %c0_3 = arith.constant 0 : index
    %c0_4 = arith.constant 0 : index
    %c0_5 = arith.constant 0 : index
    %5 = vector.load %arg4[%c0_3, %c0_4, %c0_5] : memref<1x1x256xi32, #tpu.memory_space<vmem>>, vector<1x1x256xi32>
    %6 = vector.shape_cast %5 : vector<1x1x256xi32> to vector<1x256xi32>
    %cst = arith.constant dense<0xFF800000> : vector<256xf32>
    %7 = vector.multi_reduction <maximumf>, %4, %cst [0] : vector<4x256xf32> to vector<256xf32>
    %8 = vector.shape_cast %7 : vector<256xf32> to vector<1x256xf32>
    %9 = vector.broadcast %8 : vector<1x256xf32> to vector<4x256xf32>
    %10 = arith.subf %4, %9 : vector<4x256xf32>
    %11 = math.exp %10 : vector<4x256xf32>
    %cst_6 = arith.constant dense<0.000000e+00> : vector<256xf32>
    %12 = vector.multi_reduction <add>, %11, %cst_6 [0] : vector<4x256xf32> to vector<256xf32>
    %13 = vector.shape_cast %12 : vector<256xf32> to vector<1x256xf32>
    %14 = math.log %13 : vector<1x256xf32>
    %15 = arith.addf %8, %14 : vector<1x256xf32>
    %16 = tpu.iota {dimensions = array<i32: 0>} : vector<4x256xi32>
    %17 = vector.broadcast %6 : vector<1x256xi32> to vector<4x256xi32>
    %18 = arith.cmpi eq, %16, %17 : vector<4x256xi32>
    %cst_7 = arith.constant 0.000000e+00 : f32
    %19 = vector.broadcast %cst_7 : f32 to vector<4x256xf32>
    %20 = arith.select %18, %4, %19 : vector<4x256xi1>, vector<4x256xf32>
    %cst_8 = arith.constant dense<0.000000e+00> : vector<256xf32>
    %21 = vector.multi_reduction <add>, %20, %cst_8 [0] : vector<4x256xf32> to vector<256xf32>
    %22 = vector.shape_cast %21 : vector<256xf32> to vector<1x256xf32>
    %23 = arith.subf %15, %22 : vector<1x256xf32>
    %c255_i32 = arith.constant 255 : i32
    %24 = vector.broadcast %c255_i32 : i32 to vector<1x256xi32>
    %25 = arith.cmpi ne, %6, %24 : vector<1x256xi32>
    %c0_9 = arith.constant 0 : index
    %c0_10 = arith.constant 0 : index
    %26 = vector.load %arg7[%c0_9, %c0_10] : memref<1x256xf32, #tpu.memory_space<vmem>>, vector<1x256xf32>
    %cst_11 = arith.constant 0.000000e+00 : f32
    %27 = vector.broadcast %cst_11 : f32 to vector<1x256xf32>
    %28 = arith.select %25, %23, %27 : vector<1x256xi1>, vector<1x256xf32>
    %29 = arith.addf %26, %28 : vector<1x256xf32>
    %c0_12 = arith.constant 0 : index
    %c0_13 = arith.constant 0 : index
    %30 = vector.load %arg7[%c0_12, %c0_13] : memref<1x256xf32, #tpu.memory_space<vmem>>, vector<1x256xf32>
    tpu.vector_store %arg7[%c0_12, %c0_13], %29 {strides = array<i32>} : memref<1x256xf32, #tpu.memory_space<vmem>>, vector<1x256xf32>,
    %c0_14 = arith.constant 0 : index
    %c0_15 = arith.constant 0 : index
    %31 = vector.load %arg8[%c0_14, %c0_15] : memref<1x256xi32, #tpu.memory_space<vmem>>, vector<1x256xi32>
    %32 = arith.extui %25 : vector<1x256xi1> to vector<1x256xi32>
    %33 = arith.addi %31, %32 : vector<1x256xi32>
    %c0_16 = arith.constant 0 : index
    %c0_17 = arith.constant 0 : index
    %34 = vector.load %arg8[%c0_16, %c0_17] : memref<1x256xi32, #tpu.memory_space<vmem>>, vector<1x256xi32>
    tpu.vector_store %arg8[%c0_16, %c0_17], %33 {strides = array<i32>} : memref<1x256xi32, #tpu.memory_space<vmem>>, vector<1x256xi32>,
    %c0_i32_18 = arith.constant 0 : i32
    %35 = arith.cmpi eq, %arg2, %c0_i32_18 : i32
    %36 = arith.extui %35 : i1 to i32
    %c0_i32_19 = arith.constant 0 : i32
    %37 = arith.cmpi ne, %36, %c0_i32_19 : i32
    scf.if %37 {
      %c0_20 = arith.constant 0 : index
      %c0_21 = arith.constant 0 : index
      %38 = vector.load %arg7[%c0_20, %c0_21] : memref<1x256xf32, #tpu.memory_space<vmem>>, vector<1x256xf32>
      %cst_22 = arith.constant dense<0.000000e+00> : vector<1xf32>
      %39 = vector.multi_reduction <add>, %38, %cst_22 [1] : vector<1x256xf32> to vector<1xf32>
      %40 = vector.shape_cast %39 : vector<1xf32> to vector<1x1xf32>
      %c0_23 = arith.constant 0 : index
      %c0_24 = arith.constant 0 : index
      %41 = vector.load %arg8[%c0_23, %c0_24] : memref<1x256xi32, #tpu.memory_space<vmem>>, vector<1x256xi32>
      %cst_25 = arith.constant dense<0> : vector<1xi32>
      %42 = vector.multi_reduction <add>, %41, %cst_25 [1] : vector<1x256xi32> to vector<1xi32>
      %43 = vector.shape_cast %42 : vector<1xi32> to vector<1x1xi32>
      %44 = vector.shape_cast %40 : vector<1x1xf32> to vector<1x1xf32>
      %45 = vector.broadcast %44 : vector<1x1xf32> to vector<1x128xf32>
      %c0_26 = arith.constant 0 : index
      %c0_27 = arith.constant 0 : index
      %c0_28 = arith.constant 0 : index
      %c0_29 = arith.constant 0 : index
      %46 = vector.load %arg5[%c0_26, %c0_27, %c0_28, %c0_29] : memref<1x1x1x128xf32, #tpu.memory_space<vmem>>, vector<1x1x1x128xf32>
      %47 = vector.shape_cast %46 : vector<1x1x1x128xf32> to vector<1x128xf32>
      %48 = vector.shape_cast %45 : vector<1x128xf32> to vector<1x1x1x128xf32>
      tpu.vector_store %arg5[%c0_26, %c0_27, %c0_28, %c0_29], %48 {strides = array<i32>} : memref<1x1x1x128xf32, #tpu.memory_space<vmem>>, vector<1x1x1x128xf32>,
      %49 = vector.shape_cast %43 : vector<1x1xi32> to vector<1x1xi32>
      %50 = vector.broadcast %49 : vector<1x1xi32> to vector<1x128xi32>
      %c0_30 = arith.constant 0 : index
      %c0_31 = arith.constant 0 : index
      %c0_32 = arith.constant 0 : index
      %c0_33 = arith.constant 0 : index
      %51 = vector.load %arg6[%c0_30, %c0_31, %c0_32, %c0_33] : memref<1x1x1x128xi32, #tpu.memory_space<vmem>>, vector<1x1x1x128xi32>
      %52 = vector.shape_cast %51 : vector<1x1x1x128xi32> to vector<1x128xi32>
      %53 = vector.shape_cast %50 : vector<1x128xi32> to vector<1x1x1x128xi32>
      tpu.vector_store %arg6[%c0_30, %c0_31, %c0_32, %c0_33], %53 {strides = array<i32>} : memref<1x1x1x128xi32, #tpu.memory_space<vmem>>, vector<1x1x1x128xi32>,
    } else {
    }
    return
  }
  func.func @transform_0(%arg0: i32, %arg1: i32, %arg2: i32) -> (i32, i32, i32) {
    %c1_i32 = arith.constant 1 : i32
    %0 = arith.muli %arg1, %c1_i32 : i32
    %1 = arith.addi %0, %arg2 : i32
    %c0_i32 = arith.constant 0 : i32
    %c0_i32_0 = arith.constant 0 : i32
    return %arg0, %c0_i32, %1 : i32, i32, i32
  }
  func.func @transform_1(%arg0: i32, %arg1: i32, %arg2: i32) -> (i32, i32, i32) {
    %c1_i32 = arith.constant 1 : i32
    %0 = arith.muli %arg1, %c1_i32 : i32
    %1 = arith.addi %0, %arg2 : i32
    %c0_i32 = arith.constant 0 : i32
    %c0_i32_0 = arith.constant 0 : i32
    return %arg0, %c0_i32, %1 : i32, i32, i32
  }
  func.func @transform_2(%arg0: i32, %arg1: i32, %arg2: i32) -> (i32, i32, i32, i32) {
    %c0_i32 = arith.constant 0 : i32
    %c0_i32_0 = arith.constant 0 : i32
    %c0_i32_1 = arith.constant 0 : i32
    return %arg0, %arg1, %c0_i32, %c0_i32_0 : i32, i32, i32, i32
  }
  func.func @transform_3(%arg0: i32, %arg1: i32, %arg2: i32) -> (i32, i32, i32, i32) {
    %c0_i32 = arith.constant 0 : i32
    %c0_i32_0 = arith.constant 0 : i32
    %c0_i32_1 = arith.constant 0 : i32
    return %arg0, %arg1, %c0_i32, %c0_i32_0 : i32, i32, i32, i32
  }
}

</mosaic_0001>

<llo_original>
// kernel: tpu_custom_call.1
$region0: #{tpu_custom_call.1}
  #allocation0 [shape = 'u32[]', space=smem, size = 0x4, offset = 0x4, fixed_abs, tag = 'smem constant byte address 0x4 - core index']
  #allocation1 [shape = 'u32[144,128]{1,0:T(1,128)}', space=vmem, size = 0x12000, scoped, tag = 'internal scratch']
  #allocation2 [shape = 'f32[1,256]{1,0:T(1,128)}', space=vmem, size = 0x400, scoped, tag = 'scratch operand']
  #allocation3 [shape = 's32[1,256]{1,0:T(1,128)}', space=vmem, size = 0x400, scoped, tag = 'scratch operand']
  %s0 = inlined_call_operand.hbm [shape: f32[2,4,256], index: 0, kind: input, shape index: {}]
  %s1 = inlined_call_operand.hbm [shape: s32[2,1,256], index: 1, kind: input, shape index: {}]
  %s2 = inlined_call_operand.hbm [shape: f32[2,1,1,128], index: 2, kind: output, shape index: {0}]
  %s3 = inlined_call_operand.hbm [shape: s32[2,1,1,128], index: 3, kind: output, shape index: {1}]
  %4 = xla_tuple %s2, %s3
  %s5 = sld [smem:[#allocation0]]
  $region65: #{tpu_custom_call.1} parent=0
    _
  %s7 = ssub.s32 1, %s5
  %s8 = scalar_select 0, %s7, %s5
  $region1: #{tpu_custom_call.1} parent=0
    #allocation4 [shape = 'u8[8192]{0}', space=vmem, size = 0x2000, scoped, tag = 'input window, operand 0']
    #allocation5 [shape = 's32[2]{0}', space=sflag, size = 0x8, scoped, tag = 'scoped memory for tpu_custom_call.1']
    #allocation6 [shape = 's32[2]{0}', space=sflag, size = 0x8, scoped, tag = 'scoped memory for tpu_custom_call.1']
    #allocation7 [shape = 'u8[2048]{0}', space=vmem, size = 0x800, scoped, tag = 'input window, operand 1']
    #allocation8 [shape = 's32[2]{0}', space=sflag, size = 0x8, scoped, tag = 'scoped memory for tpu_custom_call.1']
    #allocation9 [shape = 'u8[1024]{0}', space=vmem, size = 0x400, scoped, tag = 'output window, operand 0']
    #allocation10 [shape = 'u8[1024]{0}', space=vmem, size = 0x400, scoped, tag = 'output window, operand 1']
    #allocation11 [shape = 's32[2]{0}', space=sflag, size = 0x8, scoped, tag = 'scoped memory for tpu_custom_call.1']
    %9 = vsyncpa [#allocation5], 0
    %s10 = scalar_lea.sflag [#allocation5], 1
    %11 = vsyncpa %s10, 0
    %12 = vsyncpa [#allocation8], 0
    %s13 = scalar_lea.sflag [#allocation8], 1
    %14 = vsyncpa %s13, 0
    %15 = vsyncpa [#allocation6], 0
    %s16 = scalar_lea.sflag [#allocation6], 1
    %17 = vsyncpa %s16, 0
    %18 = vsyncpa [#allocation11], 0
    %s19 = scalar_lea.sflag [#allocation11], 1
    %20 = vsyncpa %s19, 0
    loop: start=0, step=1, limit=4
    $region2: #{tpu_custom_call.1} parent=1 // loop_pre_header
      _
    $region3: #{tpu_custom_call.1} parent=1 // loop_header
      %s22 = sphi 0, %s26
      %p23 = scmp.ge.s32.totalorder %s22, 4
      %s29 = sphi 0, %s48
      %s30 = sphi 0, %s44
      %s31 = sphi 0, %s40
      %s32 = sphi 0, %s29
      %s33 = sphi 0, %s30
      %s34 = sphi 0, %s31
      %s35 = sphi 0, %s32
      %s36 = sphi 0, %s33
      %s37 = sphi 0, %s34
      %s55 = sphi 0, %s57
      %s58 = sphi 0, %s55
      %s59 = sphi 0, %s58
      %s75 = sphi 0, %s59
      %s85 = sphi 0, %s87
      %s88 = sphi 0, %s85
      %s89 = sphi 0, %s88
      %s105 = sphi 0, %s89
      %s113 = sphi 0, %s115
      %s116 = sphi 0, %s113
      %s117 = sphi 0, %s116
      %s133 = sphi 0, %s117
      %s141 = sphi 0, %s143
      %s144 = sphi 0, %s141
      %s145 = sphi 0, %s144
      %s161 = sphi 0, %s145
    $region4: #{tpu_custom_call.1} parent=1 // loop_header_branch
      %25 = sbr.rel (%p23) target = $region8
    $region5: #{tpu_custom_call.1} parent=1 // loop_body
      %s27 = ssub.s32 %s22, 1
      %s28 = ssub.s32 %s22, 2
      %s38 = sadd.s32 1, %s31
      %p39 = scmp.ge.s32.totalorder %s38, 1
      %s40 = scalar_select %p39, 0, %s38
      %s41 = sadd.s32 1, %s30
      %s42 = scalar_select %p39, %s41, %s30
      %p43 = scmp.ge.s32.totalorder %s42, 1
      %s44 = scalar_select %p43, 0, %s42
      %s45 = sadd.s32 1, %s29
      %s46 = scalar_select %p43, %s45, %s29
      %p47 = scmp.ge.s32.totalorder %s46, 2
      %s48 = scalar_select %p47, 0, %s46
      %s49 = sadd.s32 %s30, %s31
      %s50 = sadd.s32 %s44, %s40
      %s51 = ssub.s32 %s29, %s48
      %s52 = ssub.s32 %s49, %s50
      %s53 = sor.u32 %s51, %s52
      %p54 = scmp.eq.s32.totalorder %s53, 0
      %s56 = sadd.s32 %s55, 1
      %s57 = scalar_select %p54, %s55, %s56
      %p60 = pneg %p54
      %p61 = scmp.eq.s32.totalorder %s22, 1
      %p62 = por %p60, %p61
      %p63 = scmp.ne.s32.totalorder %s55, %s58
      %p64 = scmp.eq.s32.totalorder %s22, 0
      %p65 = por %p63, %p64
      %p66 = scmp.ne.s32.totalorder %s55, %s58
      %p67 = scmp.eq.s32.totalorder %s27, 1
      %p68 = por %p66, %p67
      %p69 = scmp.ne.s32.totalorder %s58, %s59
      %p70 = scmp.eq.s32.totalorder %s27, 0
      %p71 = por %p69, %p70
      %p72 = scmp.ne.s32.totalorder %s58, %s59
      %p73 = scmp.eq.s32.totalorder %s28, 1
      %p74 = por %p72, %p73
      %p76 = scmp.ne.s32.totalorder %s59, %s75
      %p77 = scmp.eq.s32.totalorder %s28, 0
      %p78 = por %p76, %p77
      %s79 = sadd.s32 %s30, %s31
      %s80 = sadd.s32 %s44, %s40
      %s81 = ssub.s32 %s29, %s48
      %s82 = ssub.s32 %s79, %s80
      %s83 = sor.u32 %s81, %s82
      %p84 = scmp.eq.s32.totalorder %s83, 0
      %s86 = sadd.s32 %s85, 1
      %s87 = scalar_select %p84, %s85, %s86
      %p90 = pneg %p84
      %p91 = scmp.eq.s32.totalorder %s22, 1
      %p92 = por %p90, %p91
      %p93 = scmp.ne.s32.totalorder %s85, %s88
      %p94 = scmp.eq.s32.totalorder %s22, 0
      %p95 = por %p93, %p94
      %p96 = scmp.ne.s32.totalorder %s85, %s88
      %p97 = scmp.eq.s32.totalorder %s27, 1
      %p98 = por %p96, %p97
      %p99 = scmp.ne.s32.totalorder %s88, %s89
      %p100 = scmp.eq.s32.totalorder %s27, 0
      %p101 = por %p99, %p100
      %p102 = scmp.ne.s32.totalorder %s88, %s89
      %p103 = scmp.eq.s32.totalorder %s28, 1
      %p104 = por %p102, %p103
      %p106 = scmp.ne.s32.totalorder %s89, %s105
      %p107 = scmp.eq.s32.totalorder %s28, 0
      %p108 = por %p106, %p107
      %s109 = ssub.s32 %s29, %s48
      %s110 = ssub.s32 %s30, %s44
      %s111 = sor.u32 %s109, %s110
      %p112 = scmp.eq.s32.totalorder %s111, 0
      %s114 = sadd.s32 %s113, 1
      %s115 = scalar_select %p112, %s113, %s114
      %p118 = pneg %p112
      %p119 = scmp.eq.s32.totalorder %s22, 1
      %p120 = por %p118, %p119
      %p121 = scmp.ne.s32.totalorder %s113, %s116
      %p122 = scmp.eq.s32.totalorder %s22, 0
      %p123 = por %p121, %p122
      %p124 = scmp.ne.s32.totalorder %s113, %s116
      %p125 = scmp.eq.s32.totalorder %s27, 1
      %p126 = por %p124, %p125
      %p127 = scmp.ne.s32.totalorder %s116, %s117
      %p128 = scmp.eq.s32.totalorder %s27, 0
      %p129 = por %p127, %p128
      %p130 = scmp.ne.s32.totalorder %s116, %s117
      %p131 = scmp.eq.s32.totalorder %s28, 1
      %p132 = por %p130, %p131
      %p134 = scmp.ne.s32.totalorder %s117, %s133
      %p135 = scmp.eq.s32.totalorder %s28, 0
      %p136 = por %p134, %p135
      %s137 = ssub.s32 %s29, %s48
      %s138 = ssub.s32 %s30, %s44
      %s139 = sor.u32 %s137, %s138
      %p140 = scmp.eq.s32.totalorder %s139, 0
      %s142 = sadd.s32 %s141, 1
      %s143 = scalar_select %p140, %s141, %s142
      %p146 = pneg %p140
      %p147 = scmp.eq.s32.totalorder %s22, 1
      %p148 = por %p146, %p147
      %p149 = scmp.ne.s32.totalorder %s141, %s144
      %p150 = scmp.eq.s32.totalorder %s22, 0
      %p151 = por %p149, %p150
      %p152 = scmp.ne.s32.totalorder %s141, %s144
      %p153 = scmp.eq.s32.totalorder %s27, 1
      %p154 = por %p152, %p153
      %p155 = scmp.ne.s32.totalorder %s144, %s145
      %p156 = scmp.eq.s32.totalorder %s27, 0
      %p157 = por %p155, %p156
      %p158 = scmp.ne.s32.totalorder %s144, %s145
      %p159 = scmp.eq.s32.totalorder %s28, 1
      %p160 = por %p158, %p159
      %p162 = scmp.ne.s32.totalorder %s145, %s161
      %p163 = scmp.eq.s32.totalorder %s28, 0
      %p164 = por %p162, %p163
      %p165 = scmp.le.s32.totalorder 1, %s22
      %p166 = scmp.lt.s32.totalorder %s22, 3
      %p167 = pnand %p165, %p166
      %p168 = pneg %p167
      // Predicated region
      $region9: #{tpu_custom_call.1} parent=5 // pred_check
        _
      $region10: #{tpu_custom_call.1} parent=5 // pred_check_branch
        %170 = sbr.rel (%p167) target = $region12
      $region11: #{tpu_custom_call.1} parent=5 // pred_region
        %s171 = ssub.s32 %s22, 1
      $region12: #{tpu_custom_call.1} parent=5 // pred_fallthru
        _
      %p172 = scmp.lt.s32.totalorder %s22, 2
      // Predicated region
      $region13: #{tpu_custom_call.1} parent=5 // pred_check
        %p173 = pneg %p172
      $region14: #{tpu_custom_call.1} parent=5 // pred_check_branch
        %175 = sbr.rel (%p173) target = $region16
      $region15: #{tpu_custom_call.1} parent=5 // pred_region
        // Predicated region
        $region17: #{tpu_custom_call.1} parent=15 // pred_check
          %p176 = pneg %p65
        $region18: #{tpu_custom_call.1} parent=15 // pred_check_branch
          %178 = sbr.rel (%p176) target = $region20
        $region19: #{tpu_custom_call.1} parent=15 // pred_region
          %s179 = sand.u32 %s55, 1
          %s180 = scalar_lea.sflag [#allocation5], %s179
          %s181 = sand.u32 %s55, 1
          %s182 = smul.addr %s181, 8
          %s183 = scalar_lea.vmem [#allocation4], %s182
          %s184 = sadd.s32 %s30, %s31
          %s185 = smul.u32 2, %s184
          %s187 = ssub.s32 128, 128
          %188 = vsyncadd %s180, %s187
          %s189 = smul.addr %s29, 2
          %s190 = sadd.s32 %s185, %s189
          %s191 = smul.addr %s190, 64
          %s192 = scalar_lea.hbm %s0, %s191
          %s194 = sshll.u32 %s183, 4
          %s195 = int_to_ptr.vmem [resolvable:$true] %s194
          %197 = dma.hbm_to_vmem [thread:$0]  %s192, 128, %s195, %s180
        $region20: #{tpu_custom_call.1} parent=15 // pred_fallthru
          _
        // Predicated region
        $region21: #{tpu_custom_call.1} parent=15 // pred_check
          %p198 = pneg %p95
        $region22: #{tpu_custom_call.1} parent=15 // pred_check_branch
          %200 = sbr.rel (%p198) target = $region24
        $region23: #{tpu_custom_call.1} parent=15 // pred_region
          %s201 = sand.u32 %s85, 1
          %s202 = scalar_lea.sflag [#allocation8], %s201
          %s203 = sand.u32 %s85, 1
          %s204 = smul.addr %s203, 2
          %s205 = scalar_lea.vmem [#allocation7], %s204
          %s206 = sadd.s32 %s30, %s31
          %s207 = smul.u32 2, %s206
          %s209 = ssub.s32 32, 32
          %210 = vsyncadd %s202, %s209
          %s211 = smul.addr %s29, 2
          %s212 = sadd.s32 %s207, %s211
          %s213 = smul.addr %s212, 16
          %s214 = scalar_lea.hbm %s1, %s213
          %s216 = sshll.u32 %s205, 4
          %s217 = int_to_ptr.vmem [resolvable:$true] %s216
          %219 = dma.hbm_to_vmem [thread:$0]  %s214, 32, %s217, %s202
        $region24: #{tpu_custom_call.1} parent=15 // pred_fallthru
          _
      $region16: #{tpu_custom_call.1} parent=5 // pred_fallthru
        _
      %p220 = scmp.le.s32.totalorder 1, %s22
      %p221 = scmp.lt.s32.totalorder %s22, 3
      %p222 = pnand %p220, %p221
      %p223 = pneg %p222
      // Predicated region
      $region25: #{tpu_custom_call.1} parent=5 // pred_check
        _
      $region26: #{tpu_custom_call.1} parent=5 // pred_check_branch
        %225 = sbr.rel (%p222) target = $region28
      $region27: #{tpu_custom_call.1} parent=5 // pred_region
        %s226 = ssub.s32 %s22, 1
        %s227 = sand.u32 %s58, 1
        %s228 = scalar_lea.sflag [#allocation5], %s227
        %s229 = sand.u32 %s58, 1
        %s230 = smul.addr %s229, 8
        %s231 = scalar_lea.vmem [#allocation4], %s230
        // Predicated region
        $region29: #{tpu_custom_call.1} parent=27 // pred_check
          %p232 = pneg %p71
        $region30: #{tpu_custom_call.1} parent=27 // pred_check_branch
          %234 = sbr.rel (%p232) target = $region32
        $region31: #{tpu_custom_call.1} parent=27 // pred_region
          %235 = dma.done %s228, 128
        $region32: #{tpu_custom_call.1} parent=27 // pred_fallthru
          _
        %s236 = sand.u32 %s88, 1
        %s237 = scalar_lea.sflag [#allocation8], %s236
        %s238 = sand.u32 %s88, 1
        %s239 = smul.addr %s238, 2
        %s240 = scalar_lea.vmem [#allocation7], %s239
        // Predicated region
        $region33: #{tpu_custom_call.1} parent=27 // pred_check
          %p241 = pneg %p101
        $region34: #{tpu_custom_call.1} parent=27 // pred_check_branch
          %243 = sbr.rel (%p241) target = $region36
        $region35: #{tpu_custom_call.1} parent=27 // pred_region
          %244 = dma.done %s237, 32
        $region36: #{tpu_custom_call.1} parent=27 // pred_fallthru
          _
        %s245 = sand.u32 %s58, 1
        %s246 = scalar_lea.sflag [#allocation5], %s245
        %s247 = sand.u32 %s58, 1
        %s248 = smul.addr %s247, 8
        %s249 = scalar_lea.vmem [#allocation4], %s248
        %p250 = pneg %p71
        %p251 = pneg %p68
        %s252 = sand.u32 %s88, 1
        %s253 = scalar_lea.sflag [#allocation8], %s252
        %s254 = sand.u32 %s88, 1
        %s255 = smul.addr %s254, 2
        %s256 = scalar_lea.vmem [#allocation7], %s255
        %p257 = pneg %p101
        %p258 = pneg %p98
        %p259 = pneg %p129
        %p260 = pneg %p126
        %s261 = sand.u32 %s116, 1
        %s262 = scalar_lea.sflag [#allocation6], %s261
        %s263 = sand.u32 %s116, 1
        %s264 = scalar_lea.vmem [#allocation9], %s263
        %p265 = pneg %p157
        %p266 = pneg %p154
        %s267 = sand.u32 %s144, 1
        %s268 = scalar_lea.sflag [#allocation11], %s267
        %s269 = sand.u32 %s144, 1
        %s270 = scalar_lea.vmem [#allocation10], %s269
        %s271 = sadd.s32 %s33, %s34
        %s272 = smul.u32 2, %s271
        %s273 = sadd.s32 %s33, %s34
        %s274 = smul.u32 2, %s273
        %p275 = scmp.eq.s32.totalorder %s34, 0
        // Predicated region
        $region37: #{tpu_custom_call.1} parent=27 // pred_check
          %p276 = pneg %p275
        $region38: #{tpu_custom_call.1} parent=27 // pred_check_branch
          %278 = sbr.rel (%p276) target = $region40
        $region39: #{tpu_custom_call.1} parent=27 // pred_region
          %v279 = vlaneseq
          %vm280 = vcmp.ge.s32.totalorder %v279, 0
          %vm281 = vcmp.lt.s32.totalorder %v279, 256
          %vm282 = vmand %vm280, %vm281
          %283 = vst.msk [vmem:[#allocation2] sm:$0x3] %vm282, 0.0
          %284 = vst.msk [vmem:[#allocation3] sm:$0x3] %vm282, 0
        $region40: #{tpu_custom_call.1} parent=27 // pred_fallthru
          _
        %v285 = vld [vmem:[%s231] sm:$0xff]
        %v286 = vld [vmem:[%s240] sm:$0x3]
        %v288 = vcombine.high %v285, %v285
        %vm290 = vcmask 1043456
        %v291 = vsel %vm290, %v285, -inf
        %v292 = vrot.slane %v291, 4
        %v293 = vmax.f32 %v291, %v292
        %v294 = vrot.slane %v293, 2
        %v295 = vmax.f32 %v293, %v294
        %v296 = vrot.slane %v295, 1
        %v297 = vmax.f32 %v295, %v296
        %v298 = vsel %vm290, %v288, -inf
        %v299 = vrot.slane %v298, 4
        %v300 = vmax.f32 %v298, %v299
        %v301 = vrot.slane %v300, 2
        %v302 = vmax.f32 %v300, %v301
        %v303 = vrot.slane %v302, 1
        %v304 = vmax.f32 %v302, %v303
        %v307 = vcombine.low %v297, %v304
        %v309 = vsub.f32 %v285, %v307
        %v310 = vmul.f32 %v309, 1.442695
        %v311 = vpow.pop %v310
        %v313 = vcombine.high %v311, %v311
        %v315 = vsel %vm290, %v311, 0.0
        %v316 = vrot.slane %v315, 4
        %v317 = vadd.f32 %v315, %v316
        %v318 = vrot.slane %v317, 2
        %v319 = vadd.f32 %v317, %v318
        %v320 = vrot.slane %v319, 1
        %v321 = vadd.f32 %v319, %v320
        %v322 = vsel %vm290, %v313, 0.0
        %v323 = vrot.slane %v322, 4
        %v324 = vadd.f32 %v322, %v323
        %v325 = vrot.slane %v324, 2
        %v326 = vadd.f32 %v324, %v325
        %v327 = vrot.slane %v326, 1
        %v328 = vadd.f32 %v326, %v327
        %v329 = vlog2.pop %v321
        %v330 = vmul.f32 %v329, 0.6931472
        %v331 = vlog2.pop %v328
        %v332 = vmul.f32 %v331, 0.6931472
        %v333 = vadd.f32 %v297, %v330
        %v334 = vadd.f32 %v304, %v332
        %v335 = vlaneseq
        %v336 = vshrl.u32 %v335, 7
        %v337 = vlaneseq
        %v338 = vshrl.u32 %v337, 7
        %v339 = vsub.s32 0, %v338
        %v340 = vrot.slane %v286, %v339
        %v341 = vlaneseq
        %v342 = vshrl.u32 %v341, 7
        %v343 = vsub.s32 1, %v342
        %v344 = vrot.slane %v286, %v343
        %vm345 = vcmp.eq.s32.totalorder %v336, %v340
        %vm346 = vcmp.eq.s32.totalorder %v336, %v344
        %v347 = vsel %vm345, %v285, 0.0
        %v348 = vsel %vm346, %v288, 0.0
        %v349 = vsel %vm290, %v347, 0.0
        %v350 = vrot.slane %v349, 4
        %v351 = vadd.f32 %v349, %v350
        %v352 = vrot.slane %v351, 2
        %v353 = vadd.f32 %v351, %v352
        %v354 = vrot.slane %v353, 1
        %v355 = vadd.f32 %v353, %v354
        %v356 = vsel %vm290, %v348, 0.0
        %v357 = vrot.slane %v356, 4
        %v358 = vadd.f32 %v356, %v357
        %v359 = vrot.slane %v358, 2
        %v360 = vadd.f32 %v358, %v359
        %v361 = vrot.slane %v360, 1
        %v362 = vadd.f32 %v360, %v361
        %v363 = vsub.f32 %v333, %v355
        %v364 = vsub.f32 %v334, %v362
        %vm365 = vcmp.ne.s32.totalorder %v286, 255
        %v366 = vld [vmem:[#allocation2] sm:$0x3]
        %v369 = vcombine.low %v363, %v364
        %v371 = vunpack.c.l.s4 1966171168
        %v372 = vunpack.c.0.s8 %v371
        %v373 = vlaneseq
        %v374 = vshrl.u32 %v373, 7
        %v375 = vsub.s32 %v372, %v374
        %v376 = vrot.slane %v369, %v375
        %v378 = vunpack.c.l.s4 1966171168
        %v379 = vunpack.c.0.s8 %v378
        %v380 = vlaneseq
        %v381 = vshrl.u32 %v380, 7
        %v382 = vsub.s32 %v379, %v381
        %v383 = vrot.slane %v376, %v382
        %v385 = vsel %vm365, %v383, 0.0
        %v386 = vadd.f32 %v366, %v385
        %v387 = vlaneseq
        %vm388 = vcmp.ge.s32.totalorder %v387, 0
        %vm389 = vcmp.lt.s32.totalorder %v387, 256
        %vm390 = vmand %vm388, %vm389
        %391 = vst.msk [vmem:[#allocation2] sm:$0x3] %vm390, %v386
        %v392 = vld [vmem:[#allocation3] sm:$0x3]
        %v393 = vsel %vm365, 1, 0
        %v394 = vadd.s32 %v392, %v393
        %395 = vst.msk [vmem:[#allocation3] sm:$0x3] %vm390, %v394
        // Predicated region
        $region41: #{tpu_custom_call.1} parent=27 // pred_check
          %p396 = pneg %p275
        $region42: #{tpu_custom_call.1} parent=27 // pred_check_branch
          %398 = sbr.rel (%p396) target = $region44
        $region43: #{tpu_custom_call.1} parent=27 // pred_region
          %v399 = vld [vmem:[#allocation2] sm:$0x3]
          %v401 = vlaneseq
          %v402 = vshrl.u32 %v401, 7
          %v403 = vsub.s32 0, %v402
          %v404 = vrot.slane %v399, %v403
          %v405 = vlaneseq
          %v406 = vshrl.u32 %v405, 7
          %v407 = vsub.s32 1, %v406
          %v408 = vrot.slane %v399, %v407
          %vm411 = vcmask 1040384
          %v412 = vsel %vm411, %v404, 0.0
          %v413 = vsel %vm411, %v408, 0.0
          %v414 = vadd.f32 %v412, %v413
          %415 = vadd.xlane.f32.xlu0 %v414
          %v416 = vpop.xlane.xlu0 %415
          %v417 = vld [vmem:[#allocation3] sm:$0x3]
          %v418 = vlaneseq
          %v419 = vshrl.u32 %v418, 7
          %v420 = vsub.s32 0, %v419
          %v421 = vrot.slane %v417, %v420
          %v422 = vlaneseq
          %v423 = vshrl.u32 %v422, 7
          %v424 = vsub.s32 1, %v423
          %v425 = vrot.slane %v417, %v424
          %v426 = vsel %vm411, %v421, 0
          %v427 = vsel %vm411, %v425, 0
          %v428 = vadd.s32 %v426, %v427
          %v429 = vand.u32 %v428, 65535
          %v430 = vshrl.u32 %v428, 16
          %v431 = vcvt.s32.f32 %v429
          %v432 = vcvt.s32.f32 %v430
          %433 = vadd.xlane.f32.xlu0 %v431
          %v434 = vpop.xlane.xlu0 %433
          %435 = vadd.xlane.f32.xlu0 %v432
          %v436 = vpop.xlane.xlu0 %435
          %v437 = vcvt.f32.s32 %v434
          %v438 = vcvt.f32.s32 %v436
          %v439 = vshll.u32 %v438, 16
          %v440 = vadd.s32 %v439, %v437
          %441 = vst [vmem:[%s264] sm:$0x1] %v416
          %442 = vst [vmem:[%s270] sm:$0x1] %v440
        $region44: #{tpu_custom_call.1} parent=27 // pred_fallthru
          _
        %s443 = sand.u32 %s116, 1
        %s444 = scalar_lea.sflag [#allocation6], %s443
        %s445 = sand.u32 %s116, 1
        %s446 = scalar_lea.vmem [#allocation9], %s445
        %s447 = sand.u32 %s144, 1
        %s448 = scalar_lea.sflag [#allocation11], %s447
        %s449 = sand.u32 %s144, 1
        %s450 = scalar_lea.vmem [#allocation10], %s449
        // Predicated region
        $region45: #{tpu_custom_call.1} parent=27 // pred_check
          %p451 = pneg %p126
        $region46: #{tpu_custom_call.1} parent=27 // pred_check_branch
          %453 = sbr.rel (%p451) target = $region48
        $region47: #{tpu_custom_call.1} parent=27 // pred_region
          %s455 = ssub.s32 16, 16
          %456 = vsyncadd %s444, %s455
          %s457 = sadd.s32 %s33, %s32
          %s458 = smul.addr %s457, 16
          %s459 = scalar_lea.hbm %s2, %s458
          %s461 = sshll.u32 %s446, 4
          %s462 = int_to_ptr.vmem [resolvable:$true] %s461
          %464 = dma.vmem_to_hbm [thread:$0]  %s462, 16, %s459, %s444
        $region48: #{tpu_custom_call.1} parent=27 // pred_fallthru
          _
        // Predicated region
        $region49: #{tpu_custom_call.1} parent=27 // pred_check
          %p465 = pneg %p154
        $region50: #{tpu_custom_call.1} parent=27 // pred_check_branch
          %467 = sbr.rel (%p465) target = $region52
        $region51: #{tpu_custom_call.1} parent=27 // pred_region
          %s469 = ssub.s32 16, 16
          %470 = vsyncadd %s448, %s469
          %s471 = sadd.s32 %s33, %s32
          %s472 = smul.addr %s471, 16
          %s473 = scalar_lea.hbm %s3, %s472
          %s475 = sshll.u32 %s450, 4
          %s476 = int_to_ptr.vmem [resolvable:$true] %s475
          %478 = dma.vmem_to_hbm [thread:$0]  %s476, 16, %s473, %s448
        $region52: #{tpu_custom_call.1} parent=27 // pred_fallthru
          _
      $region28: #{tpu_custom_call.1} parent=5 // pred_fallthru
        _
      %p479 = scmp.le.s32.totalorder 2, %s22
      // Predicated region
      $region53: #{tpu_custom_call.1} parent=5 // pred_check
        %p480 = pneg %p479
      $region54: #{tpu_custom_call.1} parent=5 // pred_check_branch
        %482 = sbr.rel (%p480) target = $region56
      $region55: #{tpu_custom_call.1} parent=5 // pred_region
        %s483 = ssub.s32 %s22, 2
        // Predicated region
        $region57: #{tpu_custom_call.1} parent=55 // pred_check
          %p484 = pneg %p132
        $region58: #{tpu_custom_call.1} parent=55 // pred_check_branch
          %486 = sbr.rel (%p484) target = $region60
        $region59: #{tpu_custom_call.1} parent=55 // pred_region
          %s487 = sand.u32 %s117, 1
          %s488 = scalar_lea.sflag [#allocation6], %s487
          %s489 = sand.u32 %s117, 1
          %s490 = scalar_lea.vmem [#allocation9], %s489
          %491 = dma.done %s488, 16
        $region60: #{tpu_custom_call.1} parent=55 // pred_fallthru
          _
        // Predicated region
        $region61: #{tpu_custom_call.1} parent=55 // pred_check
          %p492 = pneg %p160
        $region62: #{tpu_custom_call.1} parent=55 // pred_check_branch
          %494 = sbr.rel (%p492) target = $region64
        $region63: #{tpu_custom_call.1} parent=55 // pred_region
          %s495 = sand.u32 %s145, 1
          %s496 = scalar_lea.sflag [#allocation11], %s495
          %s497 = sand.u32 %s145, 1
          %s498 = scalar_lea.vmem [#allocation10], %s497
          %499 = dma.done %s496, 16
        $region64: #{tpu_custom_call.1} parent=55 // pred_fallthru
          _
      $region56: #{tpu_custom_call.1} parent=5 // pred_fallthru
        _
    $region6: #{tpu_custom_call.1} parent=1 // loop_footer
      %s26 = sadd.s32 1, %s22
    $region7: #{tpu_custom_call.1} parent=1 // loop_footer_branch
      %21 = sbr.rel target = $region3
    $region8: #{tpu_custom_call.1} parent=1 // loop_exit
      _
    %500 = vsyncpa [#allocation5], 1
    %s501 = scalar_lea.sflag [#allocation5], 1
    %502 = vsyncpa %s501, 1
    %503 = vsyncpa [#allocation8], 1
    %s504 = scalar_lea.sflag [#allocation8], 1
    %505 = vsyncpa %s504, 1
    %506 = vsyncpa [#allocation6], 1
    %s507 = scalar_lea.sflag [#allocation6], 1
    %508 = vsyncpa %s507, 1
    %509 = vsyncpa [#allocation11], 1
    %s510 = scalar_lea.sflag [#allocation11], 1
    %511 = vsyncpa %s510, 1

</llo_original>
